<compile_context>
chip_gen: v6e
topology: v6e:2x2x1
jax: 0.10.0
libtpu: 0.0.40
codegen_flags: <defaults>
</compile_context>

<pallas_src>
import math
import functools
from functools import partial

import jax
import jax.numpy as jnp
from jax import lax
from jax.experimental import pallas as pl
from jax.experimental.pallas import tpu as pltpu


# ----------------------------- tile selection -------------------------------

def _divisors(n):
    ds = set()
    i = 1
    while i * i <= n:
        if n % i == 0:
            ds.add(i)
            ds.add(n // i)
        i += 1
    return sorted(ds)


def _pick_tiles(R, L, itemsize, budget_bytes, sublane_align):
    """Pick a (tile_rows, tile_lanes) block for the (R, L) reduce input.

    Legal tiles only: tile_rows is a multiple of the sublane alignment or R
    itself; tile_lanes is a multiple of 128 or L itself.  Prefers the widest
    (most lane-dense / contiguous-in-HBM) lane tile, then the largest row
    tile that fits the byte budget.
    """
    lane_cands = sorted({L, *[d for d in _divisors(L) if d % 128 == 0]},
                        reverse=True)
    row_cands = sorted({R, *[d for d in _divisors(R) if d % sublane_align == 0]},
                       reverse=True)
    for tl in lane_cands:
        fitting = [tr for tr in row_cands if tr * tl * itemsize <= budget_bytes]
        if fitting:
            return max(fitting), tl
    # Nothing fits the budget (pathological shapes): smallest legal block.
    # Still correct; the VMEM limit is raised to cover it in _forward.
    return min(row_cands), min(lane_cands)


@functools.lru_cache(maxsize=None)
def _vmem_config():
    """(block_budget_bytes, vmem_capacity_bytes), generation-aware."""
    cap = 64 << 20  # conservative default = v7x per-TC physical VMEM
    try:
        info = pltpu.get_tpu_info()
        cap_attr = getattr(info, "vmem_capacity_bytes", None)
        if cap_attr:
            cap = int(cap_attr)
    except Exception:
        pass
    # Double-buffered input footprint = 2 * block; leave slack for outputs
    # and compiler scratch.  ~12 MiB blocks on v5e/v6e/v7x (cap/5 clamps on
    # small-VMEM parts).
    block_budget = max(1 << 20, min(12 << 20, cap // 5))
    return block_budget, cap


# ------------------------------ pass-1 kernel -------------------------------

def _make_reduce_kernel(tile_rows, n_channels):
    """Accumulate per-row partial sums for (a) all elements and (b) channel-0
    elements of the (B*C, H*W) view.  Outputs are (tile_rows, 1) f32 column
    accumulators resident in VMEM across the whole grid; the final scalar
    reduce is done in the wrapper."""

    def kernel(x_ref, all_ref, ch0_ref):
        i = pl.program_id(0)
        j = pl.program_id(1)

        @pl.when((i == 0) & (j == 0))
        def _init():
            all_ref[...] = jnp.zeros_like(all_ref)
            ch0_ref[...] = jnp.zeros_like(ch0_ref)

        xt = x_ref[...].astype(jnp.float32)
        # Lane reduce over the whole tile (reused for both accumulators).
        row_sums = jnp.sum(xt, axis=1, keepdims=True)      # (tile_rows, 1) f32
        all_ref[...] += row_sums

        if n_channels == 1:
            # Channel 0 is the whole tensor.
            ch0_ref[...] += row_sums
        else:
            iota = lax.broadcasted_iota(jnp.int32, (tile_rows, 1), 0)
            if tile_rows % n_channels == 0:
                # Row-tile start is always a multiple of C: static mask.
                rows = iota
            else:
                rows = iota + i * tile_rows
            mask = (rows % n_channels) == 0
            ch0_ref[...] += jnp.where(mask, row_sums, 0.0)

    return kernel


# --------------------------------- forward ----------------------------------

@partial(jax.jit, static_argnums=(1, 2))
def _forward(x1, block_budget, vmem_cap):
    B, C, H, W = x1.shape
    dtype = x1.dtype
    itemsize = jnp.dtype(dtype).itemsize
    R, L = B * C, H * W
    sublane_align = {4: 8, 2: 16, 1: 32}.get(itemsize, 8)

    # Layout-preserving, lane-dense view: rows are (batch, channel) planes,
    # channel-0 planes are every C-th row.
    x2d = x1.reshape(R, L)

    tile_rows, tile_lanes = _pick_tiles(R, L, itemsize, block_budget,
                                        sublane_align)
    grid = (R // tile_rows, L // tile_lanes)
    block_bytes = tile_rows * tile_lanes * itemsize
    vmem_limit = int(min(vmem_cap, max(2 * block_bytes + (4 << 20), 16 << 20)))

    acc_all, acc_ch0 = pl.pallas_call(
        _make_reduce_kernel(tile_rows, C),
        grid=grid,
        in_specs=[pl.BlockSpec((tile_rows, tile_lanes), lambda i, j: (i, j))],
        out_specs=[
            pl.BlockSpec((tile_rows, 1), lambda i, j: (0, 0)),
            pl.BlockSpec((tile_rows, 1), lambda i, j: (0, 0)),
        ],
        out_shape=[
            jax.ShapeDtypeStruct((tile_rows, 1), jnp.float32),
            jax.ShapeDtypeStruct((tile_rows, 1), jnp.float32),
        ],
        compiler_params=pltpu.CompilerParams(
            dimension_semantics=("arbitrary", "arbitrary"),
            vmem_limit_bytes=vmem_limit,
        ),
    )(x2d)

    # Tiny final reductions + means + cos in f32 (XLA).
    sum_all = jnp.sum(acc_all)
    sum_ch0 = jnp.sum(acc_ch0)
    mean_ch0 = sum_ch0 / jnp.float32(B * H * W)
    mean_all = sum_all / jnp.float32(B * C * H * W)

    # Constant broadcast fill left to XLA (roofline-optimal store, no extra
    # pallas_call launch), per perf review.
    out_fill = jnp.broadcast_to(mean_ch0.astype(dtype), (B, H, W))
    cos_all = jnp.cos(mean_all).astype(dtype)
    return out_fill, cos_all


def pallas_forward(x1, block_budget=None):
    budget, cap = _vmem_config()
    if block_budget is not None:
        budget = int(block_budget)
    return _forward(x1, budget, cap)


class Model:
    """JAX/Pallas equivalent of the PyTorch Model(n)."""

    def __init__(self, n):
        if not isinstance(n, int) or n < 0:
            raise ValueError("'n' must be a non-negative integer")
        self.n = math.ceil(n)

    def __call__(self, x1):
        out_fill, cos_all = pallas_forward(x1)
        # Replicate the PyTorch list-building behaviour (host-side).
        outputs = [out_fill]
        for _ in range(self.n):
            outputs.append(cos_all)
        return outputs


if __name__ == "__main__":
    key = jax.random.PRNGKey(0)
    k1, k2, k3 = jax.random.split(key, 3)

    # Primary: the spec's own shape (B, C, H, W) = (6, 1, 100, 100).
    x1 = jax.random.normal(k1, (6, 1, 100, 100), dtype=jnp.float32)
    model = Model(n=3)
    outs = jax.block_until_ready(model(x1))

    ref_fill = jnp.ones_like(x1[:, 0, :, :]) * jnp.mean(x1[:, 0, :, :])
    ref_cos = jnp.cos(jnp.mean(x1))
    assert len(outs) == 1 + 3
    assert outs[0].shape == (6, 100, 100)
    assert jnp.allclose(outs[0], ref_fill, atol=1e-5, rtol=1e-5)
    for o in outs[1:]:
        assert jnp.allclose(o, ref_cos, atol=1e-5, rtol=1e-5)

    # Multi-channel case (exercises the channel-0 row mask, C > 1).
    x2 = jax.random.normal(k2, (2, 4, 16, 16), dtype=jnp.float32)
    fill2, cos2 = jax.block_until_ready(pallas_forward(x2))
    assert jnp.allclose(fill2, jnp.ones_like(x2[:, 0]) * jnp.mean(x2[:, 0]),
                        atol=1e-5, rtol=1e-5)
    assert jnp.allclose(cos2, jnp.cos(jnp.mean(x2)), atol=1e-5, rtol=1e-5)

    # Tight budget forces a multi-step (3 x 8) accumulating grid, 2-D lane
    # tiling, and the dynamic (tile_rows % C != 0) channel-mask path.
    x3 = jax.random.normal(k3, (8, 3, 64, 128), dtype=jnp.float32)
    fill3, cos3 = jax.block_until_ready(
        pallas_forward(x3, block_budget=8 * 1024 * 4))
    assert jnp.allclose(fill3, jnp.ones_like(x3[:, 0]) * jnp.mean(x3[:, 0]),
                        atol=1e-5, rtol=1e-5)
    assert jnp.allclose(cos3, jnp.cos(jnp.mean(x3)), atol=1e-5, rtol=1e-5)

    print("KERNEL_OK")
</pallas_src>

<mosaic_0001>
module attributes {stable_mosaic.version = 11 : i64} {
  func.func @kernel(%arg0: i32, %arg1: i32, %arg2: memref<6x10000xf32, #tpu.memory_space<vmem>>, %arg3: memref<6x1xf32, #tpu.memory_space<vmem>>, %arg4: memref<6x1xf32, #tpu.memory_space<vmem>>) attributes {dimension_semantics = [#tpu.dimension_semantics<arbitrary>, #tpu.dimension_semantics<arbitrary>], iteration_bounds = array<i64: 1, 1>, scalar_prefetch = 0 : i64, scratch_operands = 0 : i64, tpu.core_type = #tpu.core_type<tc>, window_params = [{transform_indices = @transform_0, window_bounds = array<i64: 6, 10000>}, {pipeline_mode = #tpu.pipeline_mode<synchronous>, transform_indices = @transform_1, window_bounds = array<i64: 6, 1>}, {pipeline_mode = #tpu.pipeline_mode<synchronous>, transform_indices = @transform_2, window_bounds = array<i64: 6, 1>}]} {
    %c0_i32 = arith.constant 0 : i32
    %0 = arith.cmpi eq, %arg0, %c0_i32 : i32
    %c0_i32_0 = arith.constant 0 : i32
    %1 = arith.cmpi eq, %arg1, %c0_i32_0 : i32
    %2 = arith.andi %0, %1 : i1
    %3 = arith.extui %2 : i1 to i32
    %c0_i32_1 = arith.constant 0 : i32
    %4 = arith.cmpi ne, %3, %c0_i32_1 : i32
    scf.if %4 {
      %cst_11 = arith.constant 0.000000e+00 : f32
      %14 = vector.broadcast %cst_11 : f32 to vector<6x1xf32>
      %c0_12 = arith.constant 0 : index
      %c0_13 = arith.constant 0 : index
      %15 = vector.load %arg3[%c0_12, %c0_13] : memref<6x1xf32, #tpu.memory_space<vmem>>, vector<6x1xf32>
      tpu.vector_store %arg3[%c0_12, %c0_13], %14 {strides = array<i32>} : memref<6x1xf32, #tpu.memory_space<vmem>>, vector<6x1xf32>,
      %cst_14 = arith.constant 0.000000e+00 : f32
      %16 = vector.broadcast %cst_14 : f32 to vector<6x1xf32>
      %c0_15 = arith.constant 0 : index
      %c0_16 = arith.constant 0 : index
      %17 = vector.load %arg4[%c0_15, %c0_16] : memref<6x1xf32, #tpu.memory_space<vmem>>, vector<6x1xf32>
      tpu.vector_store %arg4[%c0_15, %c0_16], %16 {strides = array<i32>} : memref<6x1xf32, #tpu.memory_space<vmem>>, vector<6x1xf32>,
    } else {
    }
    %c0 = arith.constant 0 : index
    %c0_2 = arith.constant 0 : index
    %5 = vector.load %arg2[%c0, %c0_2] : memref<6x10000xf32, #tpu.memory_space<vmem>>, vector<6x10000xf32>
    %cst = arith.constant dense<0.000000e+00> : vector<6xf32>
    %6 = vector.multi_reduction <add>, %5, %cst [1] : vector<6x10000xf32> to vector<6xf32>
    %7 = vector.shape_cast %6 : vector<6xf32> to vector<6x1xf32>
    %c0_3 = arith.constant 0 : index
    %c0_4 = arith.constant 0 : index
    %8 = vector.load %arg3[%c0_3, %c0_4] : memref<6x1xf32, #tpu.memory_space<vmem>>, vector<6x1xf32>
    %9 = arith.addf %8, %7 : vector<6x1xf32>
    %c0_5 = arith.constant 0 : index
    %c0_6 = arith.constant 0 : index
    %10 = vector.load %arg3[%c0_5, %c0_6] : memref<6x1xf32, #tpu.memory_space<vmem>>, vector<6x1xf32>
    tpu.vector_store %arg3[%c0_5, %c0_6], %9 {strides = array<i32>} : memref<6x1xf32, #tpu.memory_space<vmem>>, vector<6x1xf32>,
    %c0_7 = arith.constant 0 : index
    %c0_8 = arith.constant 0 : index
    %11 = vector.load %arg4[%c0_7, %c0_8] : memref<6x1xf32, #tpu.memory_space<vmem>>, vector<6x1xf32>
    %12 = arith.addf %11, %7 : vector<6x1xf32>
    %c0_9 = arith.constant 0 : index
    %c0_10 = arith.constant 0 : index
    %13 = vector.load %arg4[%c0_9, %c0_10] : memref<6x1xf32, #tpu.memory_space<vmem>>, vector<6x1xf32>
    tpu.vector_store %arg4[%c0_9, %c0_10], %12 {strides = array<i32>} : memref<6x1xf32, #tpu.memory_space<vmem>>, vector<6x1xf32>,
    return
  }
  func.func @transform_0(%arg0: i32, %arg1: i32) -> (i32, i32) {
    %c0_i32 = arith.constant 0 : i32
    return %arg0, %arg1 : i32, i32
  }
  func.func @transform_1(%arg0: i32, %arg1: i32) -> (i32, i32) {
    %c0_i32 = arith.constant 0 : i32
    %c0_i32_0 = arith.constant 0 : i32
    %c0_i32_1 = arith.constant 0 : i32
    return %c0_i32, %c0_i32_0 : i32, i32
  }
  func.func @transform_2(%arg0: i32, %arg1: i32) -> (i32, i32) {
    %c0_i32 = arith.constant 0 : i32
    %c0_i32_0 = arith.constant 0 : i32
    %c0_i32_1 = arith.constant 0 : i32
    return %c0_i32, %c0_i32_0 : i32, i32
  }
}

</mosaic_0001>

<llo_original>
// kernel: _forward.1
$region0: #{_forward.1}
  #allocation0 [shape = 'u32[]', space=smem, size = 0x4, offset = 0x4, fixed_abs, tag = 'smem constant byte address 0x4 - core index']
  #allocation1 [shape = 'u32[144,128]{1,0:T(1,128)}', space=vmem, size = 0x12000, scoped, tag = 'internal scratch']
  %s0 = inlined_call_operand.vmem [shape: f32[6,10000], index: 0, kind: input, shape index: {}]
  %s1 = inlined_call_operand.vmem [shape: f32[6,1], index: 1, kind: output, shape index: {0}]
  %s2 = inlined_call_operand.vmem [shape: f32[6,1], index: 2, kind: output, shape index: {1}]
  %3 = xla_tuple %s1, %s2
  %s4 = sld [smem:[#allocation0]]
  $region26: #{_forward.1} parent=0
    _
  %s6 = ssub.s32 1, %s4
  %s7 = scalar_select 0, %s6, %s4
  // Predicated region
  $region2: #{_forward.1} parent=0 // pred_check
    _
  $region3: #{_forward.1} parent=0 // pred_check_branch
    %9 = sbr.rel (0) target = $region5
  $region4: #{_forward.1} parent=0 // pred_region
    _
  $region5: #{_forward.1} parent=0 // pred_fallthru
    _
  %p10 = scmp.eq.s32.totalorder 0, 0
  %p11 = scmp.eq.s32.totalorder 0, 0
  %p12 = pnand %p10, %p11
  %p13 = pneg %p12
  // Predicated region
  $region6: #{_forward.1} parent=0 // pred_check
    _
  $region7: #{_forward.1} parent=0 // pred_check_branch
    %15 = sbr.rel (%p12) target = $region9
  $region8: #{_forward.1} parent=0 // pred_region
    %vm16 = vcmask 5120
    %17 = vst.msk [vmem:[%s1] sm:$0x3f] %vm16, 0.0
    %18 = vst.msk [vmem:[%s2] sm:$0x3f] %vm16, 0.0
  $region9: #{_forward.1} parent=0 // pred_fallthru
    _
  %v19 = vld [vmem:[%s0] sm:$0x3f]
  %v20 = vld [vmem:[%s0 + $0x8] sm:$0x3f]
  %v21 = vld [vmem:[%s0 + $0x10] sm:$0x3f]
  %v22 = vld [vmem:[%s0 + $0x18] sm:$0x3f]
  %v23 = vld [vmem:[%s0 + $0x20] sm:$0x3f]
  %v24 = vld [vmem:[%s0 + $0x28] sm:$0x3f]
  %v25 = vld [vmem:[%s0 + $0x30] sm:$0x3f]
  %v26 = vld [vmem:[%s0 + $0x38] sm:$0x3f]
  %v27 = vld [vmem:[%s0 + $0x40] sm:$0x3f]
  %v28 = vld [vmem:[%s0 + $0x48] sm:$0x3f]
  %v29 = vld [vmem:[%s0 + $0x50] sm:$0x3f]
  %v30 = vld [vmem:[%s0 + $0x58] sm:$0x3f]
  %v31 = vld [vmem:[%s0 + $0x60] sm:$0x3f]
  %v32 = vld [vmem:[%s0 + $0x68] sm:$0x3f]
  %v33 = vld [vmem:[%s0 + $0x70] sm:$0x3f]
  %v34 = vld [vmem:[%s0 + $0x78] sm:$0x3f]
  %v35 = vld [vmem:[%s0 + $0x80] sm:$0x3f]
  %v36 = vld [vmem:[%s0 + $0x88] sm:$0x3f]
  %v37 = vld [vmem:[%s0 + $0x90] sm:$0x3f]
  %v38 = vld [vmem:[%s0 + $0x98] sm:$0x3f]
  %v39 = vld [vmem:[%s0 + $0xa0] sm:$0x3f]
  %v40 = vld [vmem:[%s0 + $0xa8] sm:$0x3f]
  %v41 = vld [vmem:[%s0 + $0xb0] sm:$0x3f]
  %v42 = vld [vmem:[%s0 + $0xb8] sm:$0x3f]
  %v43 = vld [vmem:[%s0 + $0xc0] sm:$0x3f]
  %v44 = vld [vmem:[%s0 + $0xc8] sm:$0x3f]
  %v45 = vld [vmem:[%s0 + $0xd0] sm:$0x3f]
  %v46 = vld [vmem:[%s0 + $0xd8] sm:$0x3f]
  %v47 = vld [vmem:[%s0 + $0xe0] sm:$0x3f]
  %v48 = vld [vmem:[%s0 + $0xe8] sm:$0x3f]
  %v49 = vld [vmem:[%s0 + $0xf0] sm:$0x3f]
  %v50 = vld [vmem:[%s0 + $0xf8] sm:$0x3f]
  %v51 = vld [vmem:[%s0 + $0x100] sm:$0x3f]
  %v52 = vld [vmem:[%s0 + $0x108] sm:$0x3f]
  %v53 = vld [vmem:[%s0 + $0x110] sm:$0x3f]
  %v54 = vld [vmem:[%s0 + $0x118] sm:$0x3f]
  %v55 = vld [vmem:[%s0 + $0x120] sm:$0x3f]
  %v56 = vld [vmem:[%s0 + $0x128] sm:$0x3f]
  %v57 = vld [vmem:[%s0 + $0x130] sm:$0x3f]
  %v58 = vld [vmem:[%s0 + $0x138] sm:$0x3f]
  %v59 = vld [vmem:[%s0 + $0x140] sm:$0x3f]
  %v60 = vld [vmem:[%s0 + $0x148] sm:$0x3f]
  %v61 = vld [vmem:[%s0 + $0x150] sm:$0x3f]
  %v62 = vld [vmem:[%s0 + $0x158] sm:$0x3f]
  %v63 = vld [vmem:[%s0 + $0x160] sm:$0x3f]
  %v64 = vld [vmem:[%s0 + $0x168] sm:$0x3f]
  %v65 = vld [vmem:[%s0 + $0x170] sm:$0x3f]
  %v66 = vld [vmem:[%s0 + $0x178] sm:$0x3f]
  %v67 = vld [vmem:[%s0 + $0x180] sm:$0x3f]
  %v68 = vld [vmem:[%s0 + $0x188] sm:$0x3f]
  %v69 = vld [vmem:[%s0 + $0x190] sm:$0x3f]
  %v70 = vld [vmem:[%s0 + $0x198] sm:$0x3f]
  %v71 = vld [vmem:[%s0 + $0x1a0] sm:$0x3f]
  %v72 = vld [vmem:[%s0 + $0x1a8] sm:$0x3f]
  %v73 = vld [vmem:[%s0 + $0x1b0] sm:$0x3f]
  %v74 = vld [vmem:[%s0 + $0x1b8] sm:$0x3f]
  %v75 = vld [vmem:[%s0 + $0x1c0] sm:$0x3f]
  %v76 = vld [vmem:[%s0 + $0x1c8] sm:$0x3f]
  %v77 = vld [vmem:[%s0 + $0x1d0] sm:$0x3f]
  %v78 = vld [vmem:[%s0 + $0x1d8] sm:$0x3f]
  %v79 = vld [vmem:[%s0 + $0x1e0] sm:$0x3f]
  %v80 = vld [vmem:[%s0 + $0x1e8] sm:$0x3f]
  %v81 = vld [vmem:[%s0 + $0x1f0] sm:$0x3f]
  %v82 = vld [vmem:[%s0 + $0x1f8] sm:$0x3f]
  %v83 = vld [vmem:[%s0 + $0x200] sm:$0x3f]
  %v84 = vld [vmem:[%s0 + $0x208] sm:$0x3f]
  %v85 = vld [vmem:[%s0 + $0x210] sm:$0x3f]
  %v86 = vld [vmem:[%s0 + $0x218] sm:$0x3f]
  %v87 = vld [vmem:[%s0 + $0x220] sm:$0x3f]
  %v88 = vld [vmem:[%s0 + $0x228] sm:$0x3f]
  %v89 = vld [vmem:[%s0 + $0x230] sm:$0x3f]
  %v90 = vld [vmem:[%s0 + $0x238] sm:$0x3f]
  %v91 = vld [vmem:[%s0 + $0x240] sm:$0x3f]
  %v92 = vld [vmem:[%s0 + $0x248] sm:$0x3f]
  %v93 = vld [vmem:[%s0 + $0x250] sm:$0x3f]
  %v94 = vld [vmem:[%s0 + $0x258] sm:$0x3f]
  %v95 = vld [vmem:[%s0 + $0x260] sm:$0x3f]
  %v96 = vld [vmem:[%s0 + $0x268] sm:$0x3f]
  %v97 = vld [vmem:[%s0 + $0x270] sm:$0x3f]
  %vm98 = vcmask 1045504
  %v99 = vsel %vm98, %v19, 0.0
  %v100 = vsel %vm98, %v20, 0.0
  %v101 = vadd.f32 %v99, %v100
  %v102 = vsel %vm98, %v21, 0.0
  %v103 = vadd.f32 %v101, %v102
  %v104 = vsel %vm98, %v22, 0.0
  %v105 = vadd.f32 %v103, %v104
  %v106 = vsel %vm98, %v23, 0.0
  %v107 = vadd.f32 %v105, %v106
  %v108 = vsel %vm98, %v24, 0.0
  %v109 = vadd.f32 %v107, %v108
  %v110 = vsel %vm98, %v25, 0.0
  %v111 = vadd.f32 %v109, %v110
  %v112 = vsel %vm98, %v26, 0.0
  %v113 = vadd.f32 %v111, %v112
  %v114 = vsel %vm98, %v27, 0.0
  %v115 = vadd.f32 %v113, %v114
  %v116 = vsel %vm98, %v28, 0.0
  %v117 = vadd.f32 %v115, %v116
  %v118 = vsel %vm98, %v29, 0.0
  %v119 = vadd.f32 %v117, %v118
  %v120 = vsel %vm98, %v30, 0.0
  %v121 = vadd.f32 %v119, %v120
  %v122 = vsel %vm98, %v31, 0.0
  %v123 = vadd.f32 %v121, %v122
  %v124 = vsel %vm98, %v32, 0.0
  %v125 = vadd.f32 %v123, %v124
  %v126 = vsel %vm98, %v33, 0.0
  %v127 = vadd.f32 %v125, %v126
  %v128 = vsel %vm98, %v34, 0.0
  %v129 = vadd.f32 %v127, %v128
  %v130 = vsel %vm98, %v35, 0.0
  %v131 = vadd.f32 %v129, %v130
  %v132 = vsel %vm98, %v36, 0.0
  %v133 = vadd.f32 %v131, %v132
  %v134 = vsel %vm98, %v37, 0.0
  %v135 = vadd.f32 %v133, %v134
  %v136 = vsel %vm98, %v38, 0.0
  %v137 = vadd.f32 %v135, %v136
  %v138 = vsel %vm98, %v39, 0.0
  %v139 = vadd.f32 %v137, %v138
  %v140 = vsel %vm98, %v40, 0.0
  %v141 = vadd.f32 %v139, %v140
  %v142 = vsel %vm98, %v41, 0.0
  %v143 = vadd.f32 %v141, %v142
  %v144 = vsel %vm98, %v42, 0.0
  %v145 = vadd.f32 %v143, %v144
  %v146 = vsel %vm98, %v43, 0.0
  %v147 = vadd.f32 %v145, %v146
  %v148 = vsel %vm98, %v44, 0.0
  %v149 = vadd.f32 %v147, %v148
  %v150 = vsel %vm98, %v45, 0.0
  %v151 = vadd.f32 %v149, %v150
  %v152 = vsel %vm98, %v46, 0.0
  %v153 = vadd.f32 %v151, %v152
  %v154 = vsel %vm98, %v47, 0.0
  %v155 = vadd.f32 %v153, %v154
  %v156 = vsel %vm98, %v48, 0.0
  %v157 = vadd.f32 %v155, %v156
  %v158 = vsel %vm98, %v49, 0.0
  %v159 = vadd.f32 %v157, %v158
  %v160 = vsel %vm98, %v50, 0.0
  %v161 = vadd.f32 %v159, %v160
  %v162 = vsel %vm98, %v51, 0.0
  %v163 = vadd.f32 %v161, %v162
  %v164 = vsel %vm98, %v52, 0.0
  %v165 = vadd.f32 %v163, %v164
  %v166 = vsel %vm98, %v53, 0.0
  %v167 = vadd.f32 %v165, %v166
  %v168 = vsel %vm98, %v54, 0.0
  %v169 = vadd.f32 %v167, %v168
  %v170 = vsel %vm98, %v55, 0.0
  %v171 = vadd.f32 %v169, %v170
  %v172 = vsel %vm98, %v56, 0.0
  %v173 = vadd.f32 %v171, %v172
  %v174 = vsel %vm98, %v57, 0.0
  %v175 = vadd.f32 %v173, %v174
  %v176 = vsel %vm98, %v58, 0.0
  %v177 = vadd.f32 %v175, %v176
  %v178 = vsel %vm98, %v59, 0.0
  %v179 = vadd.f32 %v177, %v178
  %v180 = vsel %vm98, %v60, 0.0
  %v181 = vadd.f32 %v179, %v180
  %v182 = vsel %vm98, %v61, 0.0
  %v183 = vadd.f32 %v181, %v182
  %v184 = vsel %vm98, %v62, 0.0
  %v185 = vadd.f32 %v183, %v184
  %v186 = vsel %vm98, %v63, 0.0
  %v187 = vadd.f32 %v185, %v186
  %v188 = vsel %vm98, %v64, 0.0
  %v189 = vadd.f32 %v187, %v188
  %v190 = vsel %vm98, %v65, 0.0
  %v191 = vadd.f32 %v189, %v190
  %v192 = vsel %vm98, %v66, 0.0
  %v193 = vadd.f32 %v191, %v192
  %v194 = vsel %vm98, %v67, 0.0
  %v195 = vadd.f32 %v193, %v194
  %v196 = vsel %vm98, %v68, 0.0
  %v197 = vadd.f32 %v195, %v196
  %v198 = vsel %vm98, %v69, 0.0
  %v199 = vadd.f32 %v197, %v198
  %v200 = vsel %vm98, %v70, 0.0
  %v201 = vadd.f32 %v199, %v200
  %v202 = vsel %vm98, %v71, 0.0
  %v203 = vadd.f32 %v201, %v202
  %v204 = vsel %vm98, %v72, 0.0
  %v205 = vadd.f32 %v203, %v204
  %v206 = vsel %vm98, %v73, 0.0
  %v207 = vadd.f32 %v205, %v206
  %v208 = vsel %vm98, %v74, 0.0
  %v209 = vadd.f32 %v207, %v208
  %v210 = vsel %vm98, %v75, 0.0
  %v211 = vadd.f32 %v209, %v210
  %v212 = vsel %vm98, %v76, 0.0
  %v213 = vadd.f32 %v211, %v212
  %v214 = vsel %vm98, %v77, 0.0
  %v215 = vadd.f32 %v213, %v214
  %v216 = vsel %vm98, %v78, 0.0
  %v217 = vadd.f32 %v215, %v216
  %v218 = vsel %vm98, %v79, 0.0
  %v219 = vadd.f32 %v217, %v218
  %v220 = vsel %vm98, %v80, 0.0
  %v221 = vadd.f32 %v219, %v220
  %v222 = vsel %vm98, %v81, 0.0
  %v223 = vadd.f32 %v221, %v222
  %v224 = vsel %vm98, %v82, 0.0
  %v225 = vadd.f32 %v223, %v224
  %v226 = vsel %vm98, %v83, 0.0
  %v227 = vadd.f32 %v225, %v226
  %v228 = vsel %vm98, %v84, 0.0
  %v229 = vadd.f32 %v227, %v228
  %v230 = vsel %vm98, %v85, 0.0
  %v231 = vadd.f32 %v229, %v230
  %v232 = vsel %vm98, %v86, 0.0
  %v233 = vadd.f32 %v231, %v232
  %v234 = vsel %vm98, %v87, 0.0
  %v235 = vadd.f32 %v233, %v234
  %v236 = vsel %vm98, %v88, 0.0
  %v237 = vadd.f32 %v235, %v236
  %v238 = vsel %vm98, %v89, 0.0
  %v239 = vadd.f32 %v237, %v238
  %v240 = vsel %vm98, %v90, 0.0
  %v241 = vadd.f32 %v239, %v240
  %v242 = vsel %vm98, %v91, 0.0
  %v243 = vadd.f32 %v241, %v242
  %v244 = vsel %vm98, %v92, 0.0
  %v245 = vadd.f32 %v243, %v244
  %v246 = vsel %vm98, %v93, 0.0
  %v247 = vadd.f32 %v245, %v246
  %v248 = vsel %vm98, %v94, 0.0
  %v249 = vadd.f32 %v247, %v248
  %v250 = vsel %vm98, %v95, 0.0
  %v251 = vadd.f32 %v249, %v250
  %v252 = vsel %vm98, %v96, 0.0
  %v253 = vadd.f32 %v251, %v252
  %vm254 = vcmask 128000
  %v255 = vsel %vm254, %v97, 0.0
  %v256 = vadd.f32 %v253, %v255
  %257 = vadd.xlane.f32.xlu0 %v256
  %v258 = vpop.xlane.xlu0 %257
  %v259 = vld [vmem:[%s1] sm:$0x3f]
  %v260 = vadd.f32 %v259, %v258
  %vm261 = vcmask 5120
  %262 = vst.msk [vmem:[%s1] sm:$0x3f] %vm261, %v260
  %v263 = vld [vmem:[%s2] sm:$0x3f]
  %v264 = vadd.f32 %v263, %v258
  %265 = vst.msk [vmem:[%s2] sm:$0x3f] %vm261, %v264
  // Predicated region
  $region10: #{_forward.1} parent=0 // pred_check
    _
  $region11: #{_forward.1} parent=0 // pred_check_branch
    %267 = sbr.rel (0) target = $region13
  $region12: #{_forward.1} parent=0 // pred_region
    _
  $region13: #{_forward.1} parent=0 // pred_fallthru
    _
  // Predicated region
  $region14: #{_forward.1} parent=0 // pred_check
    _
  $region15: #{_forward.1} parent=0 // pred_check_branch
    %269 = sbr.rel (0) target = $region17
  $region16: #{_forward.1} parent=0 // pred_region
    _
  $region17: #{_forward.1} parent=0 // pred_fallthru
    _
  // Predicated region
  $region18: #{_forward.1} parent=0 // pred_check
    _
  $region19: #{_forward.1} parent=0 // pred_check_branch
    %271 = sbr.rel (0) target = $region21
  $region20: #{_forward.1} parent=0 // pred_region
    _
  $region21: #{_forward.1} parent=0 // pred_fallthru
    _
  // Predicated region
  $region22: #{_forward.1} parent=0 // pred_check
    _
  $region23: #{_forward.1} parent=0 // pred_check_branch
    %273 = sbr.rel (0) target = $region25
  $region24: #{_forward.1} parent=0 // pred_region
    _
  $region25: #{_forward.1} parent=0 // pred_fallthru
    _

</llo_original>
